<compile_context>
chip_gen: v6e
topology: v6e:2x2x1
jax: 0.10.0
libtpu: 0.0.40
codegen_flags: <defaults>
</compile_context>

<pallas_src>
import jax
import jax.numpy as jnp
from jax.experimental import pallas as pl
from jax.experimental.pallas import tpu as pltpu


# ----------------------------------------------------------------------------
# Kernel 1: initial_embed over all B*N rows at once + hoisted node_j
# projections:
#   node_small = node_embed @ wi + bi
#   nj_w1      = node_small @ w1_j            (w1 rows acting on the node_j slot)
#   nj_wf      = node_small @ wf_j            (wf rows acting on the node_j slot)
# ----------------------------------------------------------------------------
def initial_embed_kernel(node_ref, wi_ref, bi_ref, w1j_ref, wfj_ref,
                         ns_ref, njw1_ref, njwf_ref):
    x = node_ref[...]                                            # [BN, Dn]
    ns = jnp.dot(x, wi_ref[...],
                 preferred_element_type=jnp.float32) + bi_ref[...]
    ns_ref[...] = ns.astype(ns_ref.dtype)
    njw1_ref[...] = jnp.dot(
        ns, w1j_ref[...], preferred_element_type=jnp.float32
    ).astype(njw1_ref.dtype)
    njwf_ref[...] = jnp.dot(
        ns, wfj_ref[...], preferred_element_type=jnp.float32
    ).astype(njwf_ref.dtype)


# ----------------------------------------------------------------------------
# Kernel 2: per-(b, i-tile) trunk MLP + residual + final layer + LayerNorm.
# The conceptual input x = concat([edge, node_i, node_j]) is never built:
#   x @ w1 = edge @ w1_e + node_i @ w1_i + node_j @ w1_j   (last term hoisted)
#   x @ wf = edge @ wf_e + node_i @ wf_i + node_j @ wf_j   (last term hoisted)
# ----------------------------------------------------------------------------
def edge_transition_kernel(edge_ref, ni_ref, njw1_ref, njwf_ref,
                           w1e_ref, w1i_ref, b1_ref, w2_ref, b2_ref,
                           wf_ref, wfe_ref, wfi_ref, bf_ref,
                           gamma_ref, beta_ref, out_ref):
    ti = edge_ref.shape[1]
    n = edge_ref.shape[2]
    de = edge_ref.shape[3]
    h = w2_ref.shape[0]
    do = wf_ref.shape[1]

    edge = edge_ref[0]                                           # [TI, N, De]
    e2d = edge.reshape(ti * n, de)                               # leading-dim merge
    ni = ni_ref[0]                                               # [TI, Db]
    njw1 = njw1_ref[0]                                           # [N, H]
    njwf = njwf_ref[0]                                           # [N, Do]

    # ---- x @ w1 (split) + b1, then ReLU  -> h1 ----
    t_e = jnp.dot(e2d, w1e_ref[...],
                  preferred_element_type=jnp.float32)            # [TI*N, H]
    t_i = jnp.dot(ni, w1i_ref[...],
                  preferred_element_type=jnp.float32)            # [TI, H]
    xw1 = (t_e.reshape(ti, n, h)
           + t_i[:, None, :]
           + njw1[None, :, :]
           + b1_ref[...])
    h1 = jnp.maximum(xw1, 0.0).reshape(ti * n, h)                # [TI*N, H]

    # ---- second trunk layer ----
    h2 = jnp.maximum(
        jnp.dot(h1, w2_ref[...], preferred_element_type=jnp.float32)
        + b2_ref[...], 0.0)                                      # [TI*N, H]

    # ---- (trunk(x) + x) @ wf + bf ----
    z_h = jnp.dot(h2, wf_ref[...],
                  preferred_element_type=jnp.float32)            # [TI*N, Do]
    z_e = jnp.dot(e2d, wfe_ref[...],
                  preferred_element_type=jnp.float32)            # [TI*N, Do]
    z_i = jnp.dot(ni, wfi_ref[...],
                  preferred_element_type=jnp.float32)            # [TI, Do]
    z = ((z_h + z_e).reshape(ti, n, do)
         + z_i[:, None, :]
         + njwf[None, :, :]
         + bf_ref[...])

    # ---- LayerNorm over last dim (eps=1e-5, biased variance, affine) ----
    mu = jnp.mean(z, axis=-1, keepdims=True)
    zc = z - mu
    var = jnp.mean(zc * zc, axis=-1, keepdims=True)
    zn = zc * jax.lax.rsqrt(var + 1e-5)
    out = zn * gamma_ref[...] + beta_ref[...]                    # [TI, N, Do]

    out_ref[0] = out.astype(out_ref.dtype)


# ----------------------------------------------------------------------------
# Wrapper
# ----------------------------------------------------------------------------
def _pick_tile_i(n, target_rows=2048):
    """Largest useful divisor of n that is a multiple of 8 (or n itself)."""
    cands = [t for t in range(1, n + 1)
             if n % t == 0 and (t % 8 == 0 or t == n)]
    want = max(1, (target_rows + n - 1) // n)
    for t in cands:
        if t >= want:
            return t
    return cands[-1]


def edge_transition(node_embed, edge_embed, params, *, tile_i=None):
    B, N, Dn = node_embed.shape
    De = edge_embed.shape[-1]
    Db = params["wi"].shape[1]
    H = params["w1"].shape[0]
    Do = params["wf"].shape[1]
    assert H == De + 2 * Db, "hidden size must equal edge + 2*node_small dims"

    # Split trunk/final weights along the conceptual concat axis:
    # rows [0:De] act on edge, [De:De+Db] on node_i, [De+Db:] on node_j.
    w1 = params["w1"]
    wf = params["wf"]
    w1_e, w1_i, w1_j = w1[:De], w1[De:De + Db], w1[De + Db:]
    wf_e, wf_i, wf_j = wf[:De], wf[De:De + Db], wf[De + Db:]

    # ---- Kernel 1: one big matmul over all B*N rows + hoisted node_j proj ----
    BN = B * N
    node2d = node_embed.reshape(BN, Dn)
    ns, njw1, njwf = pl.pallas_call(
        initial_embed_kernel,
        out_shape=(jax.ShapeDtypeStruct((BN, Db), jnp.float32),
                   jax.ShapeDtypeStruct((BN, H), jnp.float32),
                   jax.ShapeDtypeStruct((BN, Do), jnp.float32)),
        grid_spec=pltpu.PrefetchScalarGridSpec(
            num_scalar_prefetch=0,
            grid=(1,),
            in_specs=[pl.BlockSpec((BN, Dn), lambda i: (0, 0)),
                      pl.BlockSpec((Dn, Db), lambda i: (0, 0)),
                      pl.BlockSpec((1, Db), lambda i: (0, 0)),
                      pl.BlockSpec((Db, H), lambda i: (0, 0)),
                      pl.BlockSpec((Db, Do), lambda i: (0, 0))],
            out_specs=[pl.BlockSpec((BN, Db), lambda i: (0, 0)),
                       pl.BlockSpec((BN, H), lambda i: (0, 0)),
                       pl.BlockSpec((BN, Do), lambda i: (0, 0))]),
        compiler_params=pltpu.CompilerParams(
            dimension_semantics=("arbitrary",),
            vmem_limit_bytes=64 * 1024 * 1024),
    )(node2d, params["wi"], params["bi"], w1_j, wf_j)

    ns = ns.reshape(B, N, Db)
    njw1 = njw1.reshape(B, N, H)
    njwf = njwf.reshape(B, N, Do)

    # ---- Kernel 2: (B, N // TILE_I) grid over i-tiles ----
    TI = tile_i if tile_i is not None else _pick_tile_i(N)
    assert N % TI == 0

    flops = int(2 * B * N * N * (De * H + H * H + H * Do + De * Do)
                + 2 * B * N * (Db * H + Db * Do))
    bytes_accessed = int(4 * (B * N * N * (De + Do)          # edge in, out
                              + B * N * (Db + H + Do)        # ns / hoisted proj
                              + De * H + Db * H + H * H      # weights
                              + H * Do + De * Do + Db * Do
                              + 2 * H + 3 * Do))
    cost = pl.CostEstimate(flops=flops,
                           transcendentals=int(B * N * N),
                           bytes_accessed=bytes_accessed)

    out = pl.pallas_call(
        edge_transition_kernel,
        out_shape=jax.ShapeDtypeStruct((B, N, N, Do), jnp.float32),
        grid_spec=pltpu.PrefetchScalarGridSpec(
            num_scalar_prefetch=0,
            grid=(B, N // TI),
            in_specs=[
                pl.BlockSpec((1, TI, N, De), lambda b, i: (b, i, 0, 0)),  # edge tile
                pl.BlockSpec((1, TI, Db), lambda b, i: (b, i, 0)),        # node_i rows
                pl.BlockSpec((1, N, H), lambda b, i: (b, 0, 0)),          # node_j @ w1_j
                pl.BlockSpec((1, N, Do), lambda b, i: (b, 0, 0)),         # node_j @ wf_j
                pl.BlockSpec((De, H), lambda b, i: (0, 0)),               # w1_e
                pl.BlockSpec((Db, H), lambda b, i: (0, 0)),               # w1_i
                pl.BlockSpec((1, H), lambda b, i: (0, 0)),                # b1
                pl.BlockSpec((H, H), lambda b, i: (0, 0)),                # w2
                pl.BlockSpec((1, H), lambda b, i: (0, 0)),                # b2
                pl.BlockSpec((H, Do), lambda b, i: (0, 0)),               # wf (full)
                pl.BlockSpec((De, Do), lambda b, i: (0, 0)),              # wf_e
                pl.BlockSpec((Db, Do), lambda b, i: (0, 0)),              # wf_i
                pl.BlockSpec((1, Do), lambda b, i: (0, 0)),               # bf
                pl.BlockSpec((1, Do), lambda b, i: (0, 0)),               # gamma
                pl.BlockSpec((1, Do), lambda b, i: (0, 0)),               # beta
            ],
            out_specs=pl.BlockSpec((1, TI, N, Do), lambda b, i: (b, i, 0, 0))),
        compiler_params=pltpu.CompilerParams(
            dimension_semantics=("parallel", "parallel"),
            vmem_limit_bytes=64 * 1024 * 1024),
        cost_estimate=cost,
    )(edge_embed, ns, njw1, njwf,
      w1_e, w1_i, params["b1"], params["w2"], params["b2"],
      wf, wf_e, wf_i, params["bf"], params["gamma"], params["beta"])
    return out


# ----------------------------------------------------------------------------
# Pure-JAX reference (mirrors the PyTorch forward exactly)
# ----------------------------------------------------------------------------
def edge_transition_ref(node_embed, edge_embed, p):
    B, N, _ = node_embed.shape
    ns = node_embed @ p["wi"] + p["bi"]                              # [B,N,Db]
    bias = jnp.concatenate(
        [jnp.broadcast_to(ns[:, :, None, :], (B, N, N, ns.shape[-1])),
         jnp.broadcast_to(ns[:, None, :, :], (B, N, N, ns.shape[-1]))], axis=-1)
    x = jnp.concatenate([edge_embed, bias], axis=-1).reshape(B * N * N, -1)
    h = jax.nn.relu(x @ p["w1"] + p["b1"])
    h = jax.nn.relu(h @ p["w2"] + p["b2"])
    z = (h + x) @ p["wf"] + p["bf"]
    mu = jnp.mean(z, axis=-1, keepdims=True)
    var = jnp.mean((z - mu) ** 2, axis=-1, keepdims=True)
    z = (z - mu) / jnp.sqrt(var + 1e-5) * p["gamma"] + p["beta"]
    return z.reshape(B, N, N, -1)


# ----------------------------------------------------------------------------
# Parameter construction (deterministic, synthetic).
# ----------------------------------------------------------------------------
def make_params(key, node_embed_size, edge_embed_in, edge_embed_out,
                node_dilation=2):
    Db = node_embed_size // node_dilation
    H = 2 * Db + edge_embed_in
    ks = jax.random.split(key, 4)

    def init(k, fan_in, shape, scale):
        return (jax.random.normal(k, shape, jnp.float32)
                * jnp.sqrt(scale / fan_in))

    # NOTE: real module uses truncated-normal ("relu") init for wi/w1/w2 and
    # zeros ("final") for wf; here all weights are deterministic gaussians so
    # the kernel path is meaningfully exercised (shapes/semantics identical).
    return {
        "wi": init(ks[0], node_embed_size, (node_embed_size, Db), 2.0),
        "bi": jnp.zeros((1, Db), jnp.float32),
        "w1": init(ks[1], H, (H, H), 2.0),
        "b1": jnp.zeros((1, H), jnp.float32),
        "w2": init(ks[2], H, (H, H), 2.0),
        "b2": jnp.zeros((1, H), jnp.float32),
        "wf": init(ks[3], H, (H, edge_embed_out), 1.0),
        "bf": jnp.zeros((1, edge_embed_out), jnp.float32),
        "gamma": jnp.ones((1, edge_embed_out), jnp.float32),
        "beta": jnp.zeros((1, edge_embed_out), jnp.float32),
    }


if __name__ == "__main__":
    B, N = 2, 8
    node_embed_size, edge_embed_in, edge_embed_out = 32, 16, 24

    key = jax.random.PRNGKey(0)
    k_node, k_edge, k_param = jax.random.split(key, 3)
    node_embed = jax.random.normal(k_node, (B, N, node_embed_size), jnp.float32)
    edge_embed = jax.random.normal(k_edge, (B, N, N, edge_embed_in), jnp.float32)
    params = make_params(k_param, node_embed_size, edge_embed_in, edge_embed_out)

    out = edge_transition(node_embed, edge_embed, params)
    out = jax.block_until_ready(out)

    ref = edge_transition_ref(node_embed, edge_embed, params)
    assert out.shape == (B, N, N, edge_embed_out)
    assert jnp.allclose(out, ref, atol=1e-4, rtol=1e-4), "mismatch vs reference"
    print("KERNEL_OK")
</pallas_src>

<mosaic_0001>
module attributes {stable_mosaic.version = 11 : i64} {
  func.func @initial_embed_kernel(%arg0: i32, %arg1: memref<16x32xf32, #tpu.memory_space<vmem>>, %arg2: memref<32x16xf32, #tpu.memory_space<vmem>>, %arg3: memref<1x16xf32, #tpu.memory_space<vmem>>, %arg4: memref<16x48xf32, #tpu.memory_space<vmem>>, %arg5: memref<16x24xf32, #tpu.memory_space<vmem>>, %arg6: memref<16x16xf32, #tpu.memory_space<vmem>>, %arg7: memref<16x48xf32, #tpu.memory_space<vmem>>, %arg8: memref<16x24xf32, #tpu.memory_space<vmem>>) attributes {dimension_semantics = [#tpu.dimension_semantics<arbitrary>], iteration_bounds = array<i64: 1>, scalar_prefetch = 0 : i64, scratch_operands = 0 : i64, tpu.core_type = #tpu.core_type<tc>, window_params = [{pipeline_mode = #tpu.pipeline_mode<synchronous>, transform_indices = @transform_0, window_bounds = array<i64: 16, 32>}, {pipeline_mode = #tpu.pipeline_mode<synchronous>, transform_indices = @transform_1, window_bounds = array<i64: 32, 16>}, {pipeline_mode = #tpu.pipeline_mode<synchronous>, transform_indices = @transform_2, window_bounds = array<i64: 1, 16>}, {pipeline_mode = #tpu.pipeline_mode<synchronous>, transform_indices = @transform_3, window_bounds = array<i64: 16, 48>}, {pipeline_mode = #tpu.pipeline_mode<synchronous>, transform_indices = @transform_4, window_bounds = array<i64: 16, 24>}, {pipeline_mode = #tpu.pipeline_mode<synchronous>, transform_indices = @transform_5, window_bounds = array<i64: 16, 16>}, {pipeline_mode = #tpu.pipeline_mode<synchronous>, transform_indices = @transform_6, window_bounds = array<i64: 16, 48>}, {pipeline_mode = #tpu.pipeline_mode<synchronous>, transform_indices = @transform_7, window_bounds = array<i64: 16, 24>}]} {
    %c0 = arith.constant 0 : index
    %c0_0 = arith.constant 0 : index
    %0 = vector.load %arg1[%c0, %c0_0] : memref<16x32xf32, #tpu.memory_space<vmem>>, vector<16x32xf32>
    %c0_1 = arith.constant 0 : index
    %c0_2 = arith.constant 0 : index
    %1 = vector.load %arg2[%c0_1, %c0_2] : memref<32x16xf32, #tpu.memory_space<vmem>>, vector<32x16xf32>
    %cst = arith.constant dense<0.000000e+00> : vector<16x16xf32>
    %2 = tpu.matmul %0, %1, %cst {dimension_numbers = #tpu.dot_dimension_numbers<[1], [0], [0], [1], [0, 0, 1, 1], [], []>} : vector<16x32xf32>, vector<32x16xf32>, vector<16x16xf32> -> vector<16x16xf32>
    %c0_3 = arith.constant 0 : index
    %c0_4 = arith.constant 0 : index
    %3 = vector.load %arg3[%c0_3, %c0_4] : memref<1x16xf32, #tpu.memory_space<vmem>>, vector<1x16xf32>
    %4 = vector.broadcast %3 : vector<1x16xf32> to vector<16x16xf32>
    %5 = arith.addf %2, %4 : vector<16x16xf32>
    %c0_5 = arith.constant 0 : index
    %c0_6 = arith.constant 0 : index
    %6 = vector.load %arg6[%c0_5, %c0_6] : memref<16x16xf32, #tpu.memory_space<vmem>>, vector<16x16xf32>
    tpu.vector_store %arg6[%c0_5, %c0_6], %5 {strides = array<i32>} : memref<16x16xf32, #tpu.memory_space<vmem>>, vector<16x16xf32>,
    %c0_7 = arith.constant 0 : index
    %c0_8 = arith.constant 0 : index
    %7 = vector.load %arg4[%c0_7, %c0_8] : memref<16x48xf32, #tpu.memory_space<vmem>>, vector<16x48xf32>
    %cst_9 = arith.constant dense<0.000000e+00> : vector<16x48xf32>
    %8 = tpu.matmul %5, %7, %cst_9 {dimension_numbers = #tpu.dot_dimension_numbers<[1], [0], [0], [1], [0, 0, 1, 1], [], []>} : vector<16x16xf32>, vector<16x48xf32>, vector<16x48xf32> -> vector<16x48xf32>
    %c0_10 = arith.constant 0 : index
    %c0_11 = arith.constant 0 : index
    %9 = vector.load %arg7[%c0_10, %c0_11] : memref<16x48xf32, #tpu.memory_space<vmem>>, vector<16x48xf32>
    tpu.vector_store %arg7[%c0_10, %c0_11], %8 {strides = array<i32>} : memref<16x48xf32, #tpu.memory_space<vmem>>, vector<16x48xf32>,
    %c0_12 = arith.constant 0 : index
    %c0_13 = arith.constant 0 : index
    %10 = vector.load %arg5[%c0_12, %c0_13] : memref<16x24xf32, #tpu.memory_space<vmem>>, vector<16x24xf32>
    %cst_14 = arith.constant dense<0.000000e+00> : vector<16x24xf32>
    %11 = tpu.matmul %5, %10, %cst_14 {dimension_numbers = #tpu.dot_dimension_numbers<[1], [0], [0], [1], [0, 0, 1, 1], [], []>} : vector<16x16xf32>, vector<16x24xf32>, vector<16x24xf32> -> vector<16x24xf32>
    %c0_15 = arith.constant 0 : index
    %c0_16 = arith.constant 0 : index
    %12 = vector.load %arg8[%c0_15, %c0_16] : memref<16x24xf32, #tpu.memory_space<vmem>>, vector<16x24xf32>
    tpu.vector_store %arg8[%c0_15, %c0_16], %11 {strides = array<i32>} : memref<16x24xf32, #tpu.memory_space<vmem>>, vector<16x24xf32>,
    return
  }
  func.func @transform_0(%arg0: i32) -> (i32, i32) {
    %c0_i32 = arith.constant 0 : i32
    %c0_i32_0 = arith.constant 0 : i32
    %c0_i32_1 = arith.constant 0 : i32
    return %c0_i32, %c0_i32_0 : i32, i32
  }
  func.func @transform_1(%arg0: i32) -> (i32, i32) {
    %c0_i32 = arith.constant 0 : i32
    %c0_i32_0 = arith.constant 0 : i32
    %c0_i32_1 = arith.constant 0 : i32
    return %c0_i32, %c0_i32_0 : i32, i32
  }
  func.func @transform_2(%arg0: i32) -> (i32, i32) {
    %c0_i32 = arith.constant 0 : i32
    %c0_i32_0 = arith.constant 0 : i32
    %c0_i32_1 = arith.constant 0 : i32
    return %c0_i32, %c0_i32_0 : i32, i32
  }
  func.func @transform_3(%arg0: i32) -> (i32, i32) {
    %c0_i32 = arith.constant 0 : i32
    %c0_i32_0 = arith.constant 0 : i32
    %c0_i32_1 = arith.constant 0 : i32
    return %c0_i32, %c0_i32_0 : i32, i32
  }
  func.func @transform_4(%arg0: i32) -> (i32, i32) {
    %c0_i32 = arith.constant 0 : i32
    %c0_i32_0 = arith.constant 0 : i32
    %c0_i32_1 = arith.constant 0 : i32
    return %c0_i32, %c0_i32_0 : i32, i32
  }
  func.func @transform_5(%arg0: i32) -> (i32, i32) {
    %c0_i32 = arith.constant 0 : i32
    %c0_i32_0 = arith.constant 0 : i32
    %c0_i32_1 = arith.constant 0 : i32
    return %c0_i32, %c0_i32_0 : i32, i32
  }
  func.func @transform_6(%arg0: i32) -> (i32, i32) {
    %c0_i32 = arith.constant 0 : i32
    %c0_i32_0 = arith.constant 0 : i32
    %c0_i32_1 = arith.constant 0 : i32
    return %c0_i32, %c0_i32_0 : i32, i32
  }
  func.func @transform_7(%arg0: i32) -> (i32, i32) {
    %c0_i32 = arith.constant 0 : i32
    %c0_i32_0 = arith.constant 0 : i32
    %c0_i32_1 = arith.constant 0 : i32
    return %c0_i32, %c0_i32_0 : i32, i32
  }
}

</mosaic_0001>

<llo_original>
// kernel: tpu_custom_call.1
$region0: #{tpu_custom_call.1}
  #allocation0 [shape = 'u32[]', space=smem, size = 0x4, offset = 0x4, fixed_abs, tag = 'smem constant byte address 0x4 - core index']
  #allocation1 [shape = 'u32[144,128]{1,0:T(1,128)}', space=vmem, size = 0x12000, scoped, tag = 'internal scratch']
  %s0 = inlined_call_operand.vmem [shape: f32[16,32], index: 0, kind: input, shape index: {}]
  %s1 = inlined_call_operand.vmem [shape: f32[32,16], index: 1, kind: input, shape index: {}]
  %s2 = inlined_call_operand.vmem [shape: f32[1,16], index: 2, kind: input, shape index: {}]
  %s3 = inlined_call_operand.vmem [shape: f32[16,48], index: 3, kind: input, shape index: {}]
  %s4 = inlined_call_operand.vmem [shape: f32[16,24], index: 4, kind: input, shape index: {}]
  %s5 = inlined_call_operand.hbm [shape: f32[16,16], index: 5, kind: output, shape index: {0}]
  %s6 = inlined_call_operand.hbm [shape: f32[16,48], index: 6, kind: output, shape index: {1}]
  %s7 = inlined_call_operand.hbm [shape: f32[16,24], index: 7, kind: output, shape index: {2}]
  %8 = xla_tuple %s5, %s6, %s7
  %s9 = sld [smem:[#allocation0]]
  $region46: #{tpu_custom_call.1} parent=0
    _
  %s11 = ssub.s32 1, %s9
  %s12 = scalar_select 0, %s11, %s9
  $region1: #{tpu_custom_call.1} parent=0
    #allocation2 [shape = 'u8[8192]{0}', space=vmem, size = 0x2000, scoped, tag = 'output window, operand 0, single buffered']
    #allocation3 [shape = 's32[1]{0}', space=sflag, size = 0x4, scoped, tag = 'scoped memory for tpu_custom_call.1']
    #allocation4 [shape = 'u8[8192]{0}', space=vmem, size = 0x2000, scoped, tag = 'output window, operand 1, single buffered']
    #allocation5 [shape = 's32[1]{0}', space=sflag, size = 0x4, scoped, tag = 'scoped memory for tpu_custom_call.1']
    #allocation6 [shape = 'u8[8192]{0}', space=vmem, size = 0x2000, scoped, tag = 'output window, operand 2, single buffered']
    %13 = vsyncpa [#allocation3], 0
    %14 = vsyncpa [#allocation5], 0
    // Predicated region
    $region2: #{tpu_custom_call.1} parent=1 // pred_check
      _
    $region3: #{tpu_custom_call.1} parent=1 // pred_check_branch
      %16 = sbr.rel (0) target = $region5
    $region4: #{tpu_custom_call.1} parent=1 // pred_region
      _
    $region5: #{tpu_custom_call.1} parent=1 // pred_fallthru
      _
    // Predicated region
    $region6: #{tpu_custom_call.1} parent=1 // pred_check
      _
    $region7: #{tpu_custom_call.1} parent=1 // pred_check_branch
      %18 = sbr.rel (0) target = $region9
    $region8: #{tpu_custom_call.1} parent=1 // pred_region
      _
    $region9: #{tpu_custom_call.1} parent=1 // pred_fallthru
      _
    // Predicated region
    $region10: #{tpu_custom_call.1} parent=1 // pred_check
      _
    $region11: #{tpu_custom_call.1} parent=1 // pred_check_branch
      %20 = sbr.rel (0) target = $region13
    $region12: #{tpu_custom_call.1} parent=1 // pred_region
      _
    $region13: #{tpu_custom_call.1} parent=1 // pred_fallthru
      _
    // Predicated region
    $region14: #{tpu_custom_call.1} parent=1 // pred_check
      _
    $region15: #{tpu_custom_call.1} parent=1 // pred_check_branch
      %22 = sbr.rel (0) target = $region17
    $region16: #{tpu_custom_call.1} parent=1 // pred_region
      _
    $region17: #{tpu_custom_call.1} parent=1 // pred_fallthru
      _
    // Predicated region
    $region18: #{tpu_custom_call.1} parent=1 // pred_check
      _
    $region19: #{tpu_custom_call.1} parent=1 // pred_check_branch
      %24 = sbr.rel (0) target = $region21
    $region20: #{tpu_custom_call.1} parent=1 // pred_region
      _
    $region21: #{tpu_custom_call.1} parent=1 // pred_fallthru
      _
    %v25 = vld [vmem:[%s0] sm:$0xff]
    %v26 = vld [vmem:[%s0 + $0x8] sm:$0xff]
    %v27 = vld [vmem:[%s1] sm:$0xff]
    %v28 = vld [vmem:[%s1 + $0x8] sm:$0xff]
    %v29 = vld [vmem:[%s1 + $0x10] sm:$0xff]
    %v30 = vld [vmem:[%s1 + $0x18] sm:$0xff]
    %v31 = vld [vmem:[%s2] sm:$0x1]
    %v33 = vlaneseq
    %v34 = vshrl.u32 %v33, 7
    %v35 = vsub.s32 0, %v34
    %v36 = vrot.slane %v31, %v35
    %vm38 = vcmask 261120
    %v40 = vsel %vm38, %v25, 0
    %v43 = vsel %vm38, %v26, 0
    %45 = vmatprep.subr.mxu0 0.0
    %46 = vmatpush1.msra.mxu0 0.0
    %47 = vmatprep.subr.mxu0 0.0
    %48 = vmatpush1.msra.mxu0 0.0
    %49 = vmatprep.subr.mxu0 0.0
    %50 = vmatpush1.msra.mxu0 0.0
    %51 = vmatprep.subr.mxu0 0.0
    %52 = vmatpush1.msra.mxu0 0.0
    %53 = vmatprep.subr.mxu0 0.0
    %54 = vmatpush1.msra.mxu0 0.0
    %55 = vmatprep.subr.mxu0 0.0
    %56 = vmatpush1.msra.mxu0 0.0
    %57 = vmatprep.subr.mxu0 0.0
    %58 = vmatpush1.msra.mxu0 0.0
    %59 = vmatprep.subr.mxu0 0.0
    %60 = vmatpush1.msra.mxu0 0.0
    %61 = vmatprep.subr.mxu0 0.0
    %62 = vmatpush1.msra.mxu0 0.0
    %63 = vmatprep.subr.mxu0 0.0
    %64 = vmatpush1.msra.mxu0 0.0
    %65 = vmatprep.subr.mxu0 0.0
    %66 = vmatpush1.msra.mxu0 0.0
    %67 = vmatprep.subr.mxu0 0.0
    %68 = vmatpush1.msra.mxu0 0.0
    %69 = vmatprep.subr.mxu0 0.0
    %70 = vmatpush1.msra.mxu0 %v30
    %71 = vmatprep.subr.mxu0 0.0
    %72 = vmatpush1.msra.mxu0 %v29
    %73 = vmatprep.subr.mxu0 0.0
    %74 = vmatpush1.msra.mxu0 %v28
    %75 = vmatprep.subr.mxu0 0.0
    %76 = vmatpush1.msra.mxu0 %v27
    %77 = vmatprep.subr.mxu0 0.0
    %78 = vmatpush2.msra.mxu0 0.0
    %79 = vmatprep.subr.mxu0 0.0
    %80 = vmatpush2.msra.mxu0 0.0
    %81 = vmatprep.subr.mxu0 0.0
    %82 = vmatpush2.msra.mxu0 0.0
    %83 = vmatprep.subr.mxu0 0.0
    %84 = vmatpush2.msra.mxu0 0.0
    %85 = vmatprep.subr.mxu0 0.0
    %86 = vmatpush2.msra.mxu0 0.0
    %87 = vmatprep.subr.mxu0 0.0
    %88 = vmatpush2.msra.mxu0 0.0
    %89 = vmatprep.subr.mxu0 0.0
    %90 = vmatpush2.msra.mxu0 0.0
    %91 = vmatprep.subr.mxu0 0.0
    %92 = vmatpush2.msra.mxu0 0.0
    %93 = vmatprep.subr.mxu0 0.0
    %94 = vmatpush2.msra.mxu0 0.0
    %95 = vmatprep.subr.mxu0 0.0
    %96 = vmatpush2.msra.mxu0 0.0
    %97 = vmatprep.subr.mxu0 0.0
    %98 = vmatpush2.msra.mxu0 0.0
    %99 = vmatprep.subr.mxu0 0.0
    %100 = vmatpush2.msra.mxu0 0.0
    %101 = vmatprep.subr.mxu0 0.0
    %102 = vmatpush2.msra.mxu0 0.0
    %103 = vmatprep.subr.mxu0 0.0
    %104 = vmatpush2.msra.mxu0 0.0
    %105 = vmatprep.subr.mxu0 0.0
    %106 = vmatpush2.msra.mxu0 0.0
    %107 = vmatprep.subr.mxu0 0.0
    %108 = vmatpush2.msra.mxu0 0.0
    %109 = vmatprep.mubr.f32.mxu0 0.0
    %110 = vmatmul.mubr.f32.gmra.mxu0 %v40
    %v111 = vpop.f32.mrf.mxu0
    %v112 = vadd.f32 %v36, %v111
    %v113 = vpop.f32.mrf.mxu0
    %114 = vmatprep.mubr.f32.mxu0 0.0
    %115 = vmatmul.mubr.f32.gmra.mxu0 %v43
    %v116 = vpop.f32.mrf.mxu0
    %v117 = vadd.f32 %v36, %v116
    %v118 = vpop.f32.mrf.mxu0
    %119 = vdwg.mxu0
    %vm120 = vcmask 130048
    %121 = vst.msk [vmem:[#allocation2] sm:$0xff] %vm120, %v112
    %122 = vst.msk [vmem:[#allocation2 + $0x8] sm:$0xff] %vm120, %v117
    %v123 = vld [vmem:[%s3] sm:$0xff]
    %v124 = vld [vmem:[%s3 + $0x8] sm:$0xff]
    %v126 = vsel %vm120, %v112, 0
    %v129 = vsel %vm120, %v117, 0
    %131 = vmatprep.subr.mxu0 0.0
    %132 = vmatpush1.msra.mxu0 0.0
    %133 = vmatprep.subr.mxu0 0.0
    %134 = vmatpush1.msra.mxu0 0.0
    %135 = vmatprep.subr.mxu0 0.0
    %136 = vmatpush1.msra.mxu0 0.0
    %137 = vmatprep.subr.mxu0 0.0
    %138 = vmatpush1.msra.mxu0 0.0
    %139 = vmatprep.subr.mxu0 0.0
    %140 = vmatpush1.msra.mxu0 0.0
    %141 = vmatprep.subr.mxu0 0.0
    %142 = vmatpush1.msra.mxu0 0.0
    %143 = vmatprep.subr.mxu0 0.0
    %144 = vmatpush1.msra.mxu0 0.0
    %145 = vmatprep.subr.mxu0 0.0
    %146 = vmatpush1.msra.mxu0 0.0
    %147 = vmatprep.subr.mxu0 0.0
    %148 = vmatpush1.msra.mxu0 0.0
    %149 = vmatprep.subr.mxu0 0.0
    %150 = vmatpush1.msra.mxu0 0.0
    %151 = vmatprep.subr.mxu0 0.0
    %152 = vmatpush1.msra.mxu0 0.0
    %153 = vmatprep.subr.mxu0 0.0
    %154 = vmatpush1.msra.mxu0 0.0
    %155 = vmatprep.subr.mxu0 0.0
    %156 = vmatpush1.msra.mxu0 0.0
    %157 = vmatprep.subr.mxu0 0.0
    %158 = vmatpush1.msra.mxu0 0.0
    %159 = vmatprep.subr.mxu0 0.0
    %160 = vmatpush1.msra.mxu0 %v124
    %161 = vmatprep.subr.mxu0 0.0
    %162 = vmatpush1.msra.mxu0 %v123
    %163 = vmatprep.subr.mxu0 0.0
    %164 = vmatpush2.msra.mxu0 0.0
    %165 = vmatprep.subr.mxu0 0.0
    %166 = vmatpush2.msra.mxu0 0.0
    %167 = vmatprep.subr.mxu0 0.0
    %168 = vmatpush2.msra.mxu0 0.0
    %169 = vmatprep.subr.mxu0 0.0
    %170 = vmatpush2.msra.mxu0 0.0
    %171 = vmatprep.subr.mxu0 0.0
    %172 = vmatpush2.msra.mxu0 0.0
    %173 = vmatprep.subr.mxu0 0.0
    %174 = vmatpush2.msra.mxu0 0.0
    %175 = vmatprep.subr.mxu0 0.0
    %176 = vmatpush2.msra.mxu0 0.0
    %177 = vmatprep.subr.mxu0 0.0
    %178 = vmatpush2.msra.mxu0 0.0
    %179 = vmatprep.subr.mxu0 0.0
    %180 = vmatpush2.msra.mxu0 0.0
    %181 = vmatprep.subr.mxu0 0.0
    %182 = vmatpush2.msra.mxu0 0.0
    %183 = vmatprep.subr.mxu0 0.0
    %184 = vmatpush2.msra.mxu0 0.0
    %185 = vmatprep.subr.mxu0 0.0
    %186 = vmatpush2.msra.mxu0 0.0
    %187 = vmatprep.subr.mxu0 0.0
    %188 = vmatpush2.msra.mxu0 0.0
    %189 = vmatprep.subr.mxu0 0.0
    %190 = vmatpush2.msra.mxu0 0.0
    %191 = vmatprep.subr.mxu0 0.0
    %192 = vmatpush2.msra.mxu0 0.0
    %193 = vmatprep.subr.mxu0 0.0
    %194 = vmatpush2.msra.mxu0 0.0
    %195 = vmatprep.mubr.f32.mxu0 0.0
    %196 = vmatmul.mubr.f32.gmra.mxu0 %v126
    %v197 = vpop.f32.mrf.mxu0
    %v198 = vadd.f32 0.0, %v197
    %v199 = vpop.f32.mrf.mxu0
    %200 = vmatprep.mubr.f32.mxu0 0.0
    %201 = vmatmul.mubr.f32.gmra.mxu0 %v129
    %v202 = vpop.f32.mrf.mxu0
    %v203 = vadd.f32 0.0, %v202
    %v204 = vpop.f32.mrf.mxu0
    %205 = vdwg.mxu0
    %vm206 = vcmask 392192
    %207 = vst.msk [vmem:[#allocation4] sm:$0xff] %vm206, %v198
    %208 = vst.msk [vmem:[#allocation4 + $0x8] sm:$0xff] %vm206, %v203
    %v209 = vld [vmem:[%s4] sm:$0xff]
    %v210 = vld [vmem:[%s4 + $0x8] sm:$0xff]
    %211 = vmatprep.subr.mxu0 0.0
    %212 = vmatpush1.msra.mxu0 0.0
    %213 = vmatprep.subr.mxu0 0.0
    %214 = vmatpush1.msra.mxu0 0.0
    %215 = vmatprep.subr.mxu0 0.0
    %216 = vmatpush1.msra.mxu0 0.0
    %217 = vmatprep.subr.mxu0 0.0
    %218 = vmatpush1.msra.mxu0 0.0
    %219 = vmatprep.subr.mxu0 0.0
    %220 = vmatpush1.msra.mxu0 0.0
    %221 = vmatprep.subr.mxu0 0.0
    %222 = vmatpush1.msra.mxu0 0.0
    %223 = vmatprep.subr.mxu0 0.0
    %224 = vmatpush1.msra.mxu0 0.0
    %225 = vmatprep.subr.mxu0 0.0
    %226 = vmatpush1.msra.mxu0 0.0
    %227 = vmatprep.subr.mxu0 0.0
    %228 = vmatpush1.msra.mxu0 0.0
    %229 = vmatprep.subr.mxu0 0.0
    %230 = vmatpush1.msra.mxu0 0.0
    %231 = vmatprep.subr.mxu0 0.0
    %232 = vmatpush1.msra.mxu0 0.0
    %233 = vmatprep.subr.mxu0 0.0
    %234 = vmatpush1.msra.mxu0 0.0
    %235 = vmatprep.subr.mxu0 0.0
    %236 = vmatpush1.msra.mxu0 0.0
    %237 = vmatprep.subr.mxu0 0.0
    %238 = vmatpush1.msra.mxu0 0.0
    %239 = vmatprep.subr.mxu0 0.0
    %240 = vmatpush1.msra.mxu0 %v210
    %241 = vmatprep.subr.mxu0 0.0
    %242 = vmatpush1.msra.mxu0 %v209
    %243 = vmatprep.subr.mxu0 0.0
    %244 = vmatpush2.msra.mxu0 0.0
    %245 = vmatprep.subr.mxu0 0.0
    %246 = vmatpush2.msra.mxu0 0.0
    %247 = vmatprep.subr.mxu0 0.0
    %248 = vmatpush2.msra.mxu0 0.0
    %249 = vmatprep.subr.mxu0 0.0
    %250 = vmatpush2.msra.mxu0 0.0
    %251 = vmatprep.subr.mxu0 0.0
    %252 = vmatpush2.msra.mxu0 0.0
    %253 = vmatprep.subr.mxu0 0.0
    %254 = vmatpush2.msra.mxu0 0.0
    %255 = vmatprep.subr.mxu0 0.0
    %256 = vmatpush2.msra.mxu0 0.0
    %257 = vmatprep.subr.mxu0 0.0
    %258 = vmatpush2.msra.mxu0 0.0
    %259 = vmatprep.subr.mxu0 0.0
    %260 = vmatpush2.msra.mxu0 0.0
    %261 = vmatprep.subr.mxu0 0.0
    %262 = vmatpush2.msra.mxu0 0.0
    %263 = vmatprep.subr.mxu0 0.0
    %264 = vmatpush2.msra.mxu0 0.0
    %265 = vmatprep.subr.mxu0 0.0
    %266 = vmatpush2.msra.mxu0 0.0
    %267 = vmatprep.subr.mxu0 0.0
    %268 = vmatpush2.msra.mxu0 0.0
    %269 = vmatprep.subr.mxu0 0.0
    %270 = vmatpush2.msra.mxu0 0.0
    %271 = vmatprep.subr.mxu0 0.0
    %272 = vmatpush2.msra.mxu0 0.0
    %273 = vmatprep.subr.mxu0 0.0
    %274 = vmatpush2.msra.mxu0 0.0
    %275 = vmatprep.mubr.f32.mxu0 0.0
    %276 = vmatmul.mubr.f32.gmra.mxu0 %v126
    %v277 = vpop.f32.mrf.mxu0
    %v278 = vadd.f32 0.0, %v277
    %v279 = vpop.f32.mrf.mxu0
    %280 = vmatprep.mubr.f32.mxu0 0.0
    %281 = vmatmul.mubr.f32.gmra.mxu0 %v129
    %v282 = vpop.f32.mrf.mxu0
    %v283 = vadd.f32 0.0, %v282
    %v284 = vpop.f32.mrf.mxu0
    %285 = vdwg.mxu0
    %vm286 = vcmask 195584
    %287 = vst.msk [vmem:[#allocation6] sm:$0xff] %vm286, %v278
    %288 = vst.msk [vmem:[#allocation6 + $0x8] sm:$0xff] %vm286, %v283
    // Predicated region
    $region22: #{tpu_custom_call.1} parent=1 // pred_check
      _
    $region23: #{tpu_custom_call.1} parent=1 // pred_check_branch
      %290 = sbr.rel (0) target = $region25
    $region24: #{tpu_custom_call.1} parent=1 // pred_region
      %s292 = ssub.s32 256, 256
      %293 = vsyncadd [#allocation3], %s292
      %s294 = sshll.u32 [#allocation2], 4
      %s295 = int_to_ptr.vmem [resolvable:$true] %s294
      %300 = dma.vmem_to_hbm [thread:$0]  %s295, 256, %s5, [#allocation3], 128, 128, 8
    $region25: #{tpu_custom_call.1} parent=1 // pred_fallthru
      _
    // Predicated region
    $region26: #{tpu_custom_call.1} parent=1 // pred_check
      _
    $region27: #{tpu_custom_call.1} parent=1 // pred_check_branch
      %302 = sbr.rel (0) target = $region29
    $region28: #{tpu_custom_call.1} parent=1 // pred_region
      %s304 = ssub.s32 256, 256
      %305 = vsyncadd [#allocation5], %s304
      %s306 = sshll.u32 [#allocation4], 4
      %s307 = int_to_ptr.vmem [resolvable:$true] %s306
      %312 = dma.vmem_to_hbm [thread:$0]  %s307, 256, %s6, [#allocation5], 128, 128, 8
    $region29: #{tpu_custom_call.1} parent=1 // pred_fallthru
      _
    // Predicated region
    $region30: #{tpu_custom_call.1} parent=1 // pred_check
      _
    $region31: #{tpu_custom_call.1} parent=1 // pred_check_branch
      %314 = sbr.rel (0) target = $region33
    $region32: #{tpu_custom_call.1} parent=1 // pred_region
      %s316 = ssub.s32 256, 256
      %317 = vsyncadd [#allocation5], %s316
      %s318 = sshll.u32 [#allocation6], 4
      %s319 = int_to_ptr.vmem [resolvable:$true] %s318
      %324 = dma.vmem_to_hbm [thread:$0]  %s319, 256, %s7, [#allocation5], 128, 128, 8
    $region33: #{tpu_custom_call.1} parent=1 // pred_fallthru
      _
    // Predicated region
    $region34: #{tpu_custom_call.1} parent=1 // pred_check
      _
    $region35: #{tpu_custom_call.1} parent=1 // pred_check_branch
      %326 = sbr.rel (0) target = $region37
    $region36: #{tpu_custom_call.1} parent=1 // pred_region
      %327 = dma.done [#allocation3], 256
    $region37: #{tpu_custom_call.1} parent=1 // pred_fallthru
      _
    // Predicated region
    $region38: #{tpu_custom_call.1} parent=1 // pred_check
      _
    $region39: #{tpu_custom_call.1} parent=1 // pred_check_branch
      %329 = sbr.rel (0) target = $region41
    $region40: #{tpu_custom_call.1} parent=1 // pred_region
      %330 = dma.done [#allocation5], 256
    $region41: #{tpu_custom_call.1} parent=1 // pred_fallthru
      _
    // Predicated region
    $region42: #{tpu_custom_call.1} parent=1 // pred_check
      _
    $region43: #{tpu_custom_call.1} parent=1 // pred_check_branch
      %332 = sbr.rel (0) target = $region45
    $region44: #{tpu_custom_call.1} parent=1 // pred_region
      %333 = dma.done [#allocation5], 256
    $region45: #{tpu_custom_call.1} parent=1 // pred_fallthru
      _
    %334 = vsyncpa [#allocation3], 1
    %335 = vsyncpa [#allocation5], 1

</llo_original>
